<compile_context>
chip_gen: v7x
topology: tpu7x:2x2x1
jax: 0.10.0
libtpu: 0.0.40
codegen_flags: <defaults>
</compile_context>

<pallas_src>
import numpy as np
import jax
import jax.numpy as jnp
from jax import lax
from jax.experimental import pallas as pl
from jax.experimental.pallas import tpu as pltpu


def gnn_kernel(x_ref, A_ref, PT_ref, mask_ref,
               w1_ref, b1_ref, w2_ref, b2_ref,
               wh_ref, bh_ref,
               actor_ref, critic_ref):
    f32 = jnp.float32
    A = A_ref[...]

    def sage(h, w_cat, b):
        # SAGEConv with lin_l / lin_r fused into one matmul:
        #   [A@h , h] @ [W_l^T ; W_r^T] + b
        aggr = jnp.dot(A, h, preferred_element_type=f32)
        hc = jnp.concatenate([aggr, h], axis=1)
        return jnp.dot(hc, w_cat, preferred_element_type=f32) + b

    h1 = jnp.tanh(sage(x_ref[...], w1_ref[...], b1_ref[...]))   # conv_first + tanh
    h2 = jnp.tanh(sage(h1, w2_ref[...], b2_ref[...]))           # conv_common[0] + tanh

    # Shared neighbor aggregation for BOTH heads -- computed once (CSE of A@h2).
    aggr2 = jnp.dot(A, h2, preferred_element_type=f32)
    hc2 = jnp.concatenate([aggr2, h2], axis=1)                  # (N, 2*units)

    # Fused actor + critic head (final_critic already folded into the critic row
    # host-side). Row-major head weights (2, 2*units) contracted against hc2's
    # feature axis ("NT" matmul) yield a lane-dense (2, N) result directly.
    heads = lax.dot_general(wh_ref[...], hc2, (((1,), (1,)), ((), ())),
                            preferred_element_type=f32) + bh_ref[...]
    actor = heads[0:1, :]                                       # (1, N)
    crit = heads[1:2, :]                                        # (1, N)

    # do_not_flip mask + log_softmax over the node (lane) axis.  A finite sentinel
    # is used inside the reduction; -inf is re-applied afterwards so the output
    # matches the original torch semantics exactly.
    masked = mask_ref[...] != 0.0
    actor = jnp.where(masked, -1e30, actor)
    m = jnp.max(actor, axis=1, keepdims=True)
    lse = jnp.log(jnp.sum(jnp.exp(actor - m), axis=1, keepdims=True)) + m
    actor_ref[...] = jnp.where(masked, -jnp.inf, actor - lse)

    # critic: per-graph mean pool (P^T prepped host-side) + tanh -> (1, B)
    critic_ref[...] = jnp.tanh(
        jnp.dot(crit, PT_ref[...], preferred_element_type=f32))


def _prepare(x, A, P, mask, p, feat_pad=8):
    """Host-side (trace-time) weight/layout prep: pad, transpose, fuse, fold."""
    N, F = x.shape
    pad = feat_pad - F
    x_p = jnp.pad(x, ((0, 0), (0, pad)))                       # (N, 8)
    w1l = jnp.pad(p["w1l"], ((0, 0), (0, pad)))                # (units, 8)
    w1r = jnp.pad(p["w1r"], ((0, 0), (0, pad)))
    W1 = jnp.concatenate([w1l.T, w1r.T], axis=0)               # (2*8, units)
    W2 = jnp.concatenate([p["w2l"].T, p["w2r"].T], axis=0)     # (2*units, units)

    # Fold final_critic into the critic conv, then fuse the actor + critic heads.
    wcl_f = p["wf"] @ p["wcl"]                                 # (1, units)
    wcr_f = p["wf"] @ p["wcr"]                                 # (1, units)
    bc_f = p["bc"] @ p["wf"].T + p["bf"]                       # (1, 1)
    WH = jnp.concatenate(
        [jnp.concatenate([p["wal"], p["war"]], axis=1),        # actor row
         jnp.concatenate([wcl_f, wcr_f], axis=1)],             # critic row
        axis=0)                                                # (2, 2*units)
    bH = jnp.concatenate([p["ba"], bc_f], axis=0)              # (2, 1)

    return (x_p, A, P.T, mask.reshape(1, N),
            W1, p["b1"], W2, p["b2"], WH, bH)


def model_forward(x, A, P, mask, params):
    N = x.shape[0]
    B = P.shape[0]
    args = _prepare(x, A, P, mask, params)
    vmem = pl.BlockSpec(memory_space=pltpu.MemorySpace.VMEM)
    # Lane-dense output slabs: actor (1, N), critic (1, B); reshaped in the wrapper.
    out_shape = (jax.ShapeDtypeStruct((1, N), jnp.float32),
                 jax.ShapeDtypeStruct((1, B), jnp.float32))
    actor_row, critic_row = pl.pallas_call(
        gnn_kernel,
        out_shape=out_shape,
        in_specs=[vmem] * len(args),
        out_specs=(vmem, vmem),
    )(*args)
    # NOTE: gridless whole-VMEM is right at this size; for large N the dense (N, N)
    # adjacency should instead be row-tiled with a "parallel" grid axis (and the
    # A@h aggregation cast to bf16 on v6e/v7x).
    return actor_row.reshape(N, 1), critic_row.reshape(B, 1)


def reference_forward(x, A, P, mask, p):
    # Pure-JAX reference of the same math (mirrors the PyTorch module in training mode).
    def sage(h, wl, wr, b):
        return (A @ h) @ wl.T + h @ wr.T + b
    h1 = jnp.tanh(sage(x, p["w1l"], p["w1r"], p["b1"]))
    h2 = jnp.tanh(sage(h1, p["w2l"], p["w2r"], p["b2"]))
    actor = sage(h2, p["wal"], p["war"], p["ba"])
    actor = jnp.where(mask != 0.0, -jnp.inf, actor)
    actor = jax.nn.log_softmax(actor, axis=0)
    crit = sage(h2, p["wcl"], p["wcr"], p["bc"])
    crit = crit @ p["wf"].T + p["bf"]
    critic = jnp.tanh(P @ crit)
    return actor, critic


def init_params(key, units, in_feats=7):
    ks = jax.random.split(key, 12)
    s = 0.2

    def w(k, shape):
        return (s * jax.random.normal(k, shape)).astype(jnp.float32)

    return {
        # conv_first: SAGEConv(7, units)
        "w1l": w(ks[0], (units, in_feats)), "w1r": w(ks[1], (units, in_feats)),
        "b1": jnp.zeros((1, units), jnp.float32),
        # conv_common[0]: SAGEConv(units, units)
        "w2l": w(ks[2], (units, units)), "w2r": w(ks[3], (units, units)),
        "b2": w(ks[4], (1, units)),
        # conv_actor[0]: SAGEConv(units, 1)
        "wal": w(ks[5], (1, units)), "war": w(ks[6], (1, units)),
        "ba": w(ks[7], (1, 1)),
        # conv_critic[0]: SAGEConv(units, units)
        "wcl": w(ks[8], (units, units)), "wcr": w(ks[9], (units, units)),
        "bc": w(ks[10], (1, units)),
        # final_critic: Linear(units, 1)
        "wf": w(ks[11], (1, units)), "bf": jnp.zeros((1, 1), jnp.float32),
    }


def build_graph(key, n_nodes=16, n_graphs=2, in_feats=7):
    kx, _ = jax.random.split(key)
    x = jax.random.normal(kx, (n_nodes, in_feats)).astype(jnp.float32)
    # make some nodes "do not flip" (feature column 2 nonzero) and some exactly zero
    col2 = jnp.where(jnp.arange(n_nodes) % 3 == 0, 1.0, 0.0).astype(jnp.float32)
    x = x.at[:, 2].set(col2)

    # deterministic edge list: ring + a few chords, within each half (each graph)
    per = n_nodes // n_graphs
    src, dst = [], []
    for g in range(n_graphs):
        base = g * per
        for i in range(per):
            src.append(base + i); dst.append(base + (i + 1) % per)
            src.append(base + (i + 1) % per); dst.append(base + i)
            src.append(base + i); dst.append(base + (i + 3) % per)
    src = np.array(src); dst = np.array(dst)

    # dense normalized adjacency: A[dst, src] accumulates, rows divided by in-degree
    A = np.zeros((n_nodes, n_nodes), np.float32)
    for s_, d_ in zip(src, dst):
        A[d_, s_] += 1.0
    deg = A.sum(axis=1, keepdims=True)
    A = A / np.maximum(deg, 1.0)

    # batch assignment + mean-pool matrix
    batch = np.repeat(np.arange(n_graphs), per)
    P = np.zeros((n_graphs, n_nodes), np.float32)
    for b in range(n_graphs):
        idx = np.where(batch == b)[0]
        P[b, idx] = 1.0 / len(idx)

    mask = (np.asarray(x[:, 2]) != 0.0).astype(np.float32).reshape(n_nodes, 1)
    return x, jnp.asarray(A), jnp.asarray(P), jnp.asarray(mask)


if __name__ == "__main__":
    units = 32
    key = jax.random.PRNGKey(0)
    kg, kp = jax.random.split(key)

    x, A, P, mask = build_graph(kg, n_nodes=16, n_graphs=2, in_feats=7)
    params = init_params(kp, units)

    actor, critic = model_forward(x, A, P, mask, params)
    jax.block_until_ready((actor, critic))

    ref_actor, ref_critic = reference_forward(x, A, P, mask, params)
    assert actor.shape == (16, 1) and critic.shape == (2, 1)
    assert np.allclose(np.asarray(actor), np.asarray(ref_actor), atol=1e-5, rtol=1e-5)
    assert np.allclose(np.asarray(critic), np.asarray(ref_critic), atol=1e-5, rtol=1e-5)

    print("KERNEL_OK")
</pallas_src>

<mosaic_0001>
module attributes {stable_mosaic.version = 11 : i64} {
  func.func @gnn_kernel(%arg0: memref<16x8xf32, #tpu.memory_space<vmem>>, %arg1: memref<16x16xf32, #tpu.memory_space<vmem>>, %arg2: memref<16x2xf32, #tpu.memory_space<vmem>>, %arg3: memref<1x16xf32, #tpu.memory_space<vmem>>, %arg4: memref<16x32xf32, #tpu.memory_space<vmem>>, %arg5: memref<1x32xf32, #tpu.memory_space<vmem>>, %arg6: memref<64x32xf32, #tpu.memory_space<vmem>>, %arg7: memref<1x32xf32, #tpu.memory_space<vmem>>, %arg8: memref<2x64xf32, #tpu.memory_space<vmem>>, %arg9: memref<2x1xf32, #tpu.memory_space<vmem>>, %arg10: memref<1x16xf32, #tpu.memory_space<vmem>>, %arg11: memref<1x2xf32, #tpu.memory_space<vmem>>) attributes {dimension_semantics = [], scalar_prefetch = 0 : i64, scratch_operands = 0 : i64, tpu.core_type = #tpu.core_type<tc>} {
    %c0 = arith.constant 0 : index
    %c0_0 = arith.constant 0 : index
    %0 = vector.load %arg1[%c0, %c0_0] : memref<16x16xf32, #tpu.memory_space<vmem>>, vector<16x16xf32>
    %c0_1 = arith.constant 0 : index
    %c0_2 = arith.constant 0 : index
    %1 = vector.load %arg0[%c0_1, %c0_2] : memref<16x8xf32, #tpu.memory_space<vmem>>, vector<16x8xf32>
    %c0_3 = arith.constant 0 : index
    %c0_4 = arith.constant 0 : index
    %2 = vector.load %arg4[%c0_3, %c0_4] : memref<16x32xf32, #tpu.memory_space<vmem>>, vector<16x32xf32>
    %c0_5 = arith.constant 0 : index
    %c0_6 = arith.constant 0 : index
    %3 = vector.load %arg5[%c0_5, %c0_6] : memref<1x32xf32, #tpu.memory_space<vmem>>, vector<1x32xf32>
    %cst = arith.constant dense<0.000000e+00> : vector<16x8xf32>
    %4 = tpu.matmul %0, %1, %cst {dimension_numbers = #tpu.dot_dimension_numbers<[1], [0], [0], [1], [0, 0, 1, 1], [], []>} : vector<16x16xf32>, vector<16x8xf32>, vector<16x8xf32> -> vector<16x8xf32>
    %5 = tpu.concatenate %4, %1 in 1 : vector<16x8xf32>, vector<16x8xf32> -> vector<16x16xf32>
    %cst_7 = arith.constant dense<0.000000e+00> : vector<16x32xf32>
    %6 = tpu.matmul %5, %2, %cst_7 {dimension_numbers = #tpu.dot_dimension_numbers<[1], [0], [0], [1], [0, 0, 1, 1], [], []>} : vector<16x16xf32>, vector<16x32xf32>, vector<16x32xf32> -> vector<16x32xf32>
    %7 = vector.broadcast %3 : vector<1x32xf32> to vector<16x32xf32>
    %8 = arith.addf %6, %7 : vector<16x32xf32>
    %9 = math.tanh %8 : vector<16x32xf32>
    %c0_8 = arith.constant 0 : index
    %c0_9 = arith.constant 0 : index
    %10 = vector.load %arg6[%c0_8, %c0_9] : memref<64x32xf32, #tpu.memory_space<vmem>>, vector<64x32xf32>
    %c0_10 = arith.constant 0 : index
    %c0_11 = arith.constant 0 : index
    %11 = vector.load %arg7[%c0_10, %c0_11] : memref<1x32xf32, #tpu.memory_space<vmem>>, vector<1x32xf32>
    %cst_12 = arith.constant dense<0.000000e+00> : vector<16x32xf32>
    %12 = tpu.matmul %0, %9, %cst_12 {dimension_numbers = #tpu.dot_dimension_numbers<[1], [0], [0], [1], [0, 0, 1, 1], [], []>} : vector<16x16xf32>, vector<16x32xf32>, vector<16x32xf32> -> vector<16x32xf32>
    %13 = tpu.concatenate %12, %9 in 1 : vector<16x32xf32>, vector<16x32xf32> -> vector<16x64xf32>
    %cst_13 = arith.constant dense<0.000000e+00> : vector<16x32xf32>
    %14 = tpu.matmul %13, %10, %cst_13 {dimension_numbers = #tpu.dot_dimension_numbers<[1], [0], [0], [1], [0, 0, 1, 1], [], []>} : vector<16x64xf32>, vector<64x32xf32>, vector<16x32xf32> -> vector<16x32xf32>
    %15 = vector.broadcast %11 : vector<1x32xf32> to vector<16x32xf32>
    %16 = arith.addf %14, %15 : vector<16x32xf32>
    %17 = math.tanh %16 : vector<16x32xf32>
    %cst_14 = arith.constant dense<0.000000e+00> : vector<16x32xf32>
    %18 = tpu.matmul %0, %17, %cst_14 {dimension_numbers = #tpu.dot_dimension_numbers<[1], [0], [0], [1], [0, 0, 1, 1], [], []>} : vector<16x16xf32>, vector<16x32xf32>, vector<16x32xf32> -> vector<16x32xf32>
    %19 = tpu.concatenate %18, %17 in 1 : vector<16x32xf32>, vector<16x32xf32> -> vector<16x64xf32>
    %c0_15 = arith.constant 0 : index
    %c0_16 = arith.constant 0 : index
    %20 = vector.load %arg8[%c0_15, %c0_16] : memref<2x64xf32, #tpu.memory_space<vmem>>, vector<2x64xf32>
    %cst_17 = arith.constant dense<0.000000e+00> : vector<2x16xf32>
    %21 = tpu.matmul %20, %19, %cst_17 {dimension_numbers = #tpu.dot_dimension_numbers<[1], [1], [0], [0], [0, 0, 1, 0], [], []>} : vector<2x64xf32>, vector<16x64xf32>, vector<2x16xf32> -> vector<2x16xf32>
    %c0_18 = arith.constant 0 : index
    %c0_19 = arith.constant 0 : index
    %22 = vector.load %arg9[%c0_18, %c0_19] : memref<2x1xf32, #tpu.memory_space<vmem>>, vector<2x1xf32>
    %23 = vector.broadcast %22 : vector<2x1xf32> to vector<2x16xf32>
    %24 = arith.addf %21, %23 : vector<2x16xf32>
    %25 = vector.extract_strided_slice %24 {offsets = [0, 0], sizes = [1, 16], strides = [1, 1]} : vector<2x16xf32> to vector<1x16xf32>
    %26 = vector.extract_strided_slice %24 {offsets = [1, 0], sizes = [1, 16], strides = [1, 1]} : vector<2x16xf32> to vector<1x16xf32>
    %c0_20 = arith.constant 0 : index
    %c0_21 = arith.constant 0 : index
    %27 = vector.load %arg3[%c0_20, %c0_21] : memref<1x16xf32, #tpu.memory_space<vmem>>, vector<1x16xf32>
    %cst_22 = arith.constant 0.000000e+00 : f32
    %28 = vector.broadcast %cst_22 : f32 to vector<1x16xf32>
    %29 = arith.cmpf one, %27, %28 : vector<1x16xf32>
    %cst_23 = arith.constant -1.000000e+30 : f32
    %30 = vector.broadcast %cst_23 : f32 to vector<1x16xf32>
    %31 = arith.select %29, %30, %25 : vector<1x16xi1>, vector<1x16xf32>
    %cst_24 = arith.constant dense<0xFF800000> : vector<1xf32>
    %32 = vector.multi_reduction <maximumf>, %31, %cst_24 [1] : vector<1x16xf32> to vector<1xf32>
    %33 = vector.shape_cast %32 : vector<1xf32> to vector<1x1xf32>
    %34 = vector.broadcast %33 : vector<1x1xf32> to vector<1x16xf32>
    %35 = arith.subf %31, %34 : vector<1x16xf32>
    %36 = math.exp %35 : vector<1x16xf32>
    %cst_25 = arith.constant dense<0.000000e+00> : vector<1xf32>
    %37 = vector.multi_reduction <add>, %36, %cst_25 [1] : vector<1x16xf32> to vector<1xf32>
    %38 = vector.shape_cast %37 : vector<1xf32> to vector<1x1xf32>
    %39 = math.log %38 : vector<1x1xf32>
    %40 = arith.addf %39, %33 : vector<1x1xf32>
    %41 = vector.broadcast %40 : vector<1x1xf32> to vector<1x16xf32>
    %42 = arith.subf %31, %41 : vector<1x16xf32>
    %cst_26 = arith.constant 0xFF800000 : f32
    %43 = vector.broadcast %cst_26 : f32 to vector<1x16xf32>
    %44 = arith.select %29, %43, %42 : vector<1x16xi1>, vector<1x16xf32>
    %c0_27 = arith.constant 0 : index
    %c0_28 = arith.constant 0 : index
    %45 = vector.load %arg10[%c0_27, %c0_28] : memref<1x16xf32, #tpu.memory_space<vmem>>, vector<1x16xf32>
    tpu.vector_store %arg10[%c0_27, %c0_28], %44 {strides = array<i32>} : memref<1x16xf32, #tpu.memory_space<vmem>>, vector<1x16xf32>,
    %c0_29 = arith.constant 0 : index
    %c0_30 = arith.constant 0 : index
    %46 = vector.load %arg2[%c0_29, %c0_30] : memref<16x2xf32, #tpu.memory_space<vmem>>, vector<16x2xf32>
    %cst_31 = arith.constant dense<0.000000e+00> : vector<1x2xf32>
    %47 = tpu.matmul %26, %46, %cst_31 {dimension_numbers = #tpu.dot_dimension_numbers<[1], [0], [0], [1], [0, 0, 1, 1], [], []>} : vector<1x16xf32>, vector<16x2xf32>, vector<1x2xf32> -> vector<1x2xf32>
    %48 = math.tanh %47 : vector<1x2xf32>
    %c0_32 = arith.constant 0 : index
    %c0_33 = arith.constant 0 : index
    %49 = vector.load %arg11[%c0_32, %c0_33] : memref<1x2xf32, #tpu.memory_space<vmem>>, vector<1x2xf32>
    tpu.vector_store %arg11[%c0_32, %c0_33], %48 {strides = array<i32>} : memref<1x2xf32, #tpu.memory_space<vmem>>, vector<1x2xf32>,
    return
  }
}

</mosaic_0001>

<llo_original>
// kernel: tpu_custom_call.1
$region0: #{tpu_custom_call.1}
  #allocation0 [shape = 'u32[]', space=smem, size = 0x4, offset = 0x4, fixed_abs, tag = 'smem constant byte address 0x4 - core index']
  #allocation1 [shape = 'u32[144,128]{1,0:T(1,128)}', space=vmem, size = 0x12000, scoped, tag = 'internal scratch']
  %s0 = inlined_call_operand.vmem [shape: f32[16,8], index: 0, kind: input, shape index: {}]
  %s1 = inlined_call_operand.vmem [shape: f32[16,16], index: 1, kind: input, shape index: {}]
  %s2 = inlined_call_operand.vmem [shape: f32[16,2], index: 2, kind: input, shape index: {}]
  %s3 = inlined_call_operand.vmem [shape: f32[1,16], index: 3, kind: input, shape index: {}]
  %s4 = inlined_call_operand.vmem [shape: f32[16,32], index: 4, kind: input, shape index: {}]
  %s5 = inlined_call_operand.vmem [shape: f32[1,32], index: 5, kind: input, shape index: {}]
  %s6 = inlined_call_operand.vmem [shape: f32[64,32], index: 6, kind: input, shape index: {}]
  %s7 = inlined_call_operand.vmem [shape: f32[1,32], index: 7, kind: input, shape index: {}]
  %s8 = inlined_call_operand.vmem [shape: f32[2,64], index: 8, kind: input, shape index: {}]
  %s9 = inlined_call_operand.vmem [shape: f32[2,1], index: 9, kind: input, shape index: {}]
  %s10 = inlined_call_operand.hbm [shape: f32[1,16], index: 10, kind: output, shape index: {0}]
  %s11 = inlined_call_operand.hbm [shape: f32[1,2], index: 11, kind: output, shape index: {1}]
  %12 = xla_tuple %s10, %s11
  %s13 = sld [smem:[#allocation0]]
  $region58: #{tpu_custom_call.1} parent=0
    _
  %s15 = ssub.s32 1, %s13
  %s16 = scalar_select 0, %s15, %s13
  $region1: #{tpu_custom_call.1} parent=0
    #allocation2 [shape = 'u8[512]{0}', space=vmem, size = 0x400, scoped, tag = 'output window, operand 0, single buffered']
    #allocation3 [shape = 's32[1]{0}', space=sflag, size = 0x4, scoped, tag = 'scoped memory for tpu_custom_call.1']
    #allocation4 [shape = 'u8[512]{0}', space=vmem, size = 0x400, scoped, tag = 'output window, operand 1, single buffered']
    #allocation5 [shape = 's32[1]{0}', space=sflag, size = 0x4, scoped, tag = 'scoped memory for tpu_custom_call.1']
    %17 = vsyncpa [#allocation3], 0
    %18 = vsyncpa [#allocation5], 0
    // Predicated region
    $region2: #{tpu_custom_call.1} parent=1 // pred_check
      _
    $region3: #{tpu_custom_call.1} parent=1 // pred_check_branch
      %20 = sbr.rel (0) target = $region5
    $region4: #{tpu_custom_call.1} parent=1 // pred_region
      _
    $region5: #{tpu_custom_call.1} parent=1 // pred_fallthru
      _
    // Predicated region
    $region6: #{tpu_custom_call.1} parent=1 // pred_check
      _
    $region7: #{tpu_custom_call.1} parent=1 // pred_check_branch
      %22 = sbr.rel (0) target = $region9
    $region8: #{tpu_custom_call.1} parent=1 // pred_region
      _
    $region9: #{tpu_custom_call.1} parent=1 // pred_fallthru
      _
    // Predicated region
    $region10: #{tpu_custom_call.1} parent=1 // pred_check
      _
    $region11: #{tpu_custom_call.1} parent=1 // pred_check_branch
      %24 = sbr.rel (0) target = $region13
    $region12: #{tpu_custom_call.1} parent=1 // pred_region
      _
    $region13: #{tpu_custom_call.1} parent=1 // pred_fallthru
      _
    // Predicated region
    $region14: #{tpu_custom_call.1} parent=1 // pred_check
      _
    $region15: #{tpu_custom_call.1} parent=1 // pred_check_branch
      %26 = sbr.rel (0) target = $region17
    $region16: #{tpu_custom_call.1} parent=1 // pred_region
      _
    $region17: #{tpu_custom_call.1} parent=1 // pred_fallthru
      _
    // Predicated region
    $region18: #{tpu_custom_call.1} parent=1 // pred_check
      _
    $region19: #{tpu_custom_call.1} parent=1 // pred_check_branch
      %28 = sbr.rel (0) target = $region21
    $region20: #{tpu_custom_call.1} parent=1 // pred_region
      _
    $region21: #{tpu_custom_call.1} parent=1 // pred_fallthru
      _
    // Predicated region
    $region22: #{tpu_custom_call.1} parent=1 // pred_check
      _
    $region23: #{tpu_custom_call.1} parent=1 // pred_check_branch
      %30 = sbr.rel (0) target = $region25
    $region24: #{tpu_custom_call.1} parent=1 // pred_region
      _
    $region25: #{tpu_custom_call.1} parent=1 // pred_fallthru
      _
    // Predicated region
    $region26: #{tpu_custom_call.1} parent=1 // pred_check
      _
    $region27: #{tpu_custom_call.1} parent=1 // pred_check_branch
      %32 = sbr.rel (0) target = $region29
    $region28: #{tpu_custom_call.1} parent=1 // pred_region
      _
    $region29: #{tpu_custom_call.1} parent=1 // pred_fallthru
      _
    // Predicated region
    $region30: #{tpu_custom_call.1} parent=1 // pred_check
      _
    $region31: #{tpu_custom_call.1} parent=1 // pred_check_branch
      %34 = sbr.rel (0) target = $region33
    $region32: #{tpu_custom_call.1} parent=1 // pred_region
      _
    $region33: #{tpu_custom_call.1} parent=1 // pred_fallthru
      _
    // Predicated region
    $region34: #{tpu_custom_call.1} parent=1 // pred_check
      _
    $region35: #{tpu_custom_call.1} parent=1 // pred_check_branch
      %36 = sbr.rel (0) target = $region37
    $region36: #{tpu_custom_call.1} parent=1 // pred_region
      _
    $region37: #{tpu_custom_call.1} parent=1 // pred_fallthru
      _
    // Predicated region
    $region38: #{tpu_custom_call.1} parent=1 // pred_check
      _
    $region39: #{tpu_custom_call.1} parent=1 // pred_check_branch
      %38 = sbr.rel (0) target = $region41
    $region40: #{tpu_custom_call.1} parent=1 // pred_region
      _
    $region41: #{tpu_custom_call.1} parent=1 // pred_fallthru
      _
    %v39 = vld [vmem:[%s1] sm:$0xff]
    %v40 = vld [vmem:[%s1 + $0x8] sm:$0xff]
    %v41 = vld [vmem:[%s0] sm:$0xff]
    %v42 = vld [vmem:[%s0 + $0x8] sm:$0xff]
    %v43 = vld [vmem:[%s4] sm:$0xff]
    %v44 = vld [vmem:[%s4 + $0x8] sm:$0xff]
    %v45 = vld [vmem:[%s5] sm:$0x1]
    %vm46 = vcmask 130048
    %v48 = vsel %vm46, %v39, 0
    %v51 = vsel %vm46, %v40, 0
    %53 = vmatprep.subr.mxu0 0.0
    %54 = vmatpush1.msra.mxu0 %v41
    %55 = vmatprep.subr.mxu0 0.0
    %56 = vmatpush1.msra.mxu0 %v42
    %57 = vmatprep.subr.mxu0 0.0
    %58 = vmatpush1.msra.mxu0 0.0
    %59 = vmatprep.subr.mxu0 0.0
    %60 = vmatpush1.msra.mxu0 0.0
    %61 = vmatprep.subr.mxu0 0.0
    %62 = vmatpush1.msra.mxu0 0.0
    %63 = vmatprep.subr.mxu0 0.0
    %64 = vmatpush1.msra.mxu0 0.0
    %65 = vmatprep.subr.mxu0 0.0
    %66 = vmatpush1.msra.mxu0 0.0
    %67 = vmatprep.subr.mxu0 0.0
    %68 = vmatpush1.msra.mxu0 0.0
    %69 = vmatprep.subr.mxu0 0.0
    %70 = vmatpush1.msra.mxu0 0.0
    %71 = vmatprep.subr.mxu0 0.0
    %72 = vmatpush1.msra.mxu0 0.0
    %73 = vmatprep.subr.mxu0 0.0
    %74 = vmatpush1.msra.mxu0 0.0
    %75 = vmatprep.subr.mxu0 0.0
    %76 = vmatpush1.msra.mxu0 0.0
    %77 = vmatprep.subr.mxu0 0.0
    %78 = vmatpush1.msra.mxu0 0.0
    %79 = vmatprep.subr.mxu0 0.0
    %80 = vmatpush1.msra.mxu0 0.0
    %81 = vmatprep.subr.mxu0 0.0
    %82 = vmatpush1.msra.mxu0 0.0
    %83 = vmatprep.subr.mxu0 0.0
    %84 = vmatpush1.msra.mxu0 0.0
    %85 = vmatprep.subr.mxu0 0.0
    %86 = vmatpush1.msra.mxu0 0.0
    %87 = vmatprep.subr.mxu0 0.0
    %88 = vmatpush1.msra.mxu0 0.0
    %89 = vmatprep.subr.mxu0 0.0
    %90 = vmatpush1.msra.mxu0 0.0
    %91 = vmatprep.subr.mxu0 0.0
    %92 = vmatpush1.msra.mxu0 0.0
    %93 = vmatprep.subr.mxu0 0.0
    %94 = vmatpush1.msra.mxu0 0.0
    %95 = vmatprep.subr.mxu0 0.0
    %96 = vmatpush1.msra.mxu0 0.0
    %97 = vmatprep.subr.mxu0 0.0
    %98 = vmatpush1.msra.mxu0 0.0
    %99 = vmatprep.subr.mxu0 0.0
    %100 = vmatpush1.msra.mxu0 0.0
    %101 = vmatprep.subr.mxu0 0.0
    %102 = vmatpush1.msra.mxu0 0.0
    %103 = vmatprep.subr.mxu0 0.0
    %104 = vmatpush1.msra.mxu0 0.0
    %105 = vmatprep.subr.mxu0 0.0
    %106 = vmatpush1.msra.mxu0 0.0
    %107 = vmatprep.subr.mxu0 0.0
    %108 = vmatpush1.msra.mxu0 0.0
    %109 = vmatprep.subr.mxu0 0.0
    %110 = vmatpush1.msra.mxu0 0.0
    %111 = vmatprep.subr.mxu0 0.0
    %112 = vmatpush1.msra.mxu0 0.0
    %113 = vmatprep.subr.mxu0 0.0
    %114 = vmatpush1.msra.mxu0 0.0
    %115 = vmatprep.subr.mxu0 0.0
    %116 = vmatpush1.msra.mxu0 0.0
    %117 = vmatprep.mubr.f32.mxu0 0.0
    %118 = vmatmul.mubr.f32.gmra.mrb[0].mxu0 %v48
    %v119 = vpop.f32.mrb[0].mxu0
    %v120 = vadd.f32 0.0, %v119
    %v121 = vpop.f32.mrb[0].mxu0
    %122 = vmatprep.mubr.f32.mxu0 0.0
    %123 = vmatmul.mubr.f32.gmra.mrb[0].mxu0 %v51
    %v124 = vpop.f32.mrb[0].mxu0
    %v125 = vadd.f32 0.0, %v124
    %v126 = vpop.f32.mrb[0].mxu0
    %127 = vdwg.mxu0
    %130 = vrot.lane.b32.xlu0 %v41, 8
    %v131 = vpop.permute.xlu0 %130
    %132 = vrot.lane.b32.xlu0 %v42, 8
    %v133 = vpop.permute.xlu0 %132
    %vm136 = vcmask 64512
    %v137 = vsel %vm136, %v120, %v131
    %v138 = vsel %vm136, %v125, %v133
    %v140 = vlaneseq
    %v141 = vshrl.u32 %v140, 7
    %v142 = vsub.s32 0, %v141
    %v143 = vrot.slane %v45, %v142
    %v146 = vsel %vm46, %v137, 0
    %v149 = vsel %vm46, %v138, 0
    %151 = vmatprep.subr.mxu0 0.0
    %152 = vmatpush1.msra.mxu0 %v43
    %153 = vmatprep.subr.mxu0 0.0
    %154 = vmatpush1.msra.mxu0 %v44
    %155 = vmatprep.subr.mxu0 0.0
    %156 = vmatpush1.msra.mxu0 0.0
    %157 = vmatprep.subr.mxu0 0.0
    %158 = vmatpush1.msra.mxu0 0.0
    %159 = vmatprep.subr.mxu0 0.0
    %160 = vmatpush1.msra.mxu0 0.0
    %161 = vmatprep.subr.mxu0 0.0
    %162 = vmatpush1.msra.mxu0 0.0
    %163 = vmatprep.subr.mxu0 0.0
    %164 = vmatpush1.msra.mxu0 0.0
    %165 = vmatprep.subr.mxu0 0.0
    %166 = vmatpush1.msra.mxu0 0.0
    %167 = vmatprep.subr.mxu0 0.0
    %168 = vmatpush1.msra.mxu0 0.0
    %169 = vmatprep.subr.mxu0 0.0
    %170 = vmatpush1.msra.mxu0 0.0
    %171 = vmatprep.subr.mxu0 0.0
    %172 = vmatpush1.msra.mxu0 0.0
    %173 = vmatprep.subr.mxu0 0.0
    %174 = vmatpush1.msra.mxu0 0.0
    %175 = vmatprep.subr.mxu0 0.0
    %176 = vmatpush1.msra.mxu0 0.0
    %177 = vmatprep.subr.mxu0 0.0
    %178 = vmatpush1.msra.mxu0 0.0
    %179 = vmatprep.subr.mxu0 0.0
    %180 = vmatpush1.msra.mxu0 0.0
    %181 = vmatprep.subr.mxu0 0.0
    %182 = vmatpush1.msra.mxu0 0.0
    %183 = vmatprep.subr.mxu0 0.0
    %184 = vmatpush1.msra.mxu0 0.0
    %185 = vmatprep.subr.mxu0 0.0
    %186 = vmatpush1.msra.mxu0 0.0
    %187 = vmatprep.subr.mxu0 0.0
    %188 = vmatpush1.msra.mxu0 0.0
    %189 = vmatprep.subr.mxu0 0.0
    %190 = vmatpush1.msra.mxu0 0.0
    %191 = vmatprep.subr.mxu0 0.0
    %192 = vmatpush1.msra.mxu0 0.0
    %193 = vmatprep.subr.mxu0 0.0
    %194 = vmatpush1.msra.mxu0 0.0
    %195 = vmatprep.subr.mxu0 0.0
    %196 = vmatpush1.msra.mxu0 0.0
    %197 = vmatprep.subr.mxu0 0.0
    %198 = vmatpush1.msra.mxu0 0.0
    %199 = vmatprep.subr.mxu0 0.0
    %200 = vmatpush1.msra.mxu0 0.0
    %201 = vmatprep.subr.mxu0 0.0
    %202 = vmatpush1.msra.mxu0 0.0
    %203 = vmatprep.subr.mxu0 0.0
    %204 = vmatpush1.msra.mxu0 0.0
    %205 = vmatprep.subr.mxu0 0.0
    %206 = vmatpush1.msra.mxu0 0.0
    %207 = vmatprep.subr.mxu0 0.0
    %208 = vmatpush1.msra.mxu0 0.0
    %209 = vmatprep.subr.mxu0 0.0
    %210 = vmatpush1.msra.mxu0 0.0
    %211 = vmatprep.subr.mxu0 0.0
    %212 = vmatpush1.msra.mxu0 0.0
    %213 = vmatprep.subr.mxu0 0.0
    %214 = vmatpush1.msra.mxu0 0.0
    %215 = vmatprep.mubr.f32.mxu0 0.0
    %216 = vmatmul.mubr.f32.gmra.mrb[0].mxu0 %v146
    %v217 = vpop.f32.mrb[0].mxu0
    %v218 = vadd.f32 %v143, %v217
    %v219 = vpop.f32.mrb[0].mxu0
    %220 = vmatprep.mubr.f32.mxu0 0.0
    %221 = vmatmul.mubr.f32.gmra.mrb[0].mxu0 %v149
    %v222 = vpop.f32.mrb[0].mxu0
    %v223 = vadd.f32 %v143, %v222
    %v224 = vpop.f32.mrb[0].mxu0
    %225 = vdwg.mxu0
    %v226 = vtanh.pop %v218
    %v227 = vtanh.pop %v223
    %v228 = vld [vmem:[%s6] sm:$0xff]
    %v229 = vld [vmem:[%s6 + $0x8] sm:$0xff]
    %v230 = vld [vmem:[%s6 + $0x10] sm:$0xff]
    %v231 = vld [vmem:[%s6 + $0x18] sm:$0xff]
    %v232 = vld [vmem:[%s6 + $0x20] sm:$0xff]
    %v233 = vld [vmem:[%s6 + $0x28] sm:$0xff]
    %v234 = vld [vmem:[%s6 + $0x30] sm:$0xff]
    %v235 = vld [vmem:[%s6 + $0x38] sm:$0xff]
    %v236 = vld [vmem:[%s7] sm:$0x1]
    %237 = vmatprep.subr.mxu0 0.0
    %238 = vmatpush1.msra.mxu0 %v226
    %239 = vmatprep.subr.mxu0 0.0
    %240 = vmatpush1.msra.mxu0 %v227
    %241 = vmatprep.subr.mxu0 0.0
    %242 = vmatpush1.msra.mxu0 0.0
    %243 = vmatprep.subr.mxu0 0.0
    %244 = vmatpush1.msra.mxu0 0.0
    %245 = vmatprep.subr.mxu0 0.0
    %246 = vmatpush1.msra.mxu0 0.0
    %247 = vmatprep.subr.mxu0 0.0
    %248 = vmatpush1.msra.mxu0 0.0
    %249 = vmatprep.subr.mxu0 0.0
    %250 = vmatpush1.msra.mxu0 0.0
    %251 = vmatprep.subr.mxu0 0.0
    %252 = vmatpush1.msra.mxu0 0.0
    %253 = vmatprep.subr.mxu0 0.0
    %254 = vmatpush1.msra.mxu0 0.0
    %255 = vmatprep.subr.mxu0 0.0
    %256 = vmatpush1.msra.mxu0 0.0
    %257 = vmatprep.subr.mxu0 0.0
    %258 = vmatpush1.msra.mxu0 0.0
    %259 = vmatprep.subr.mxu0 0.0
    %260 = vmatpush1.msra.mxu0 0.0
    %261 = vmatprep.subr.mxu0 0.0
    %262 = vmatpush1.msra.mxu0 0.0
    %263 = vmatprep.subr.mxu0 0.0
    %264 = vmatpush1.msra.mxu0 0.0
    %265 = vmatprep.subr.mxu0 0.0
    %266 = vmatpush1.msra.mxu0 0.0
    %267 = vmatprep.subr.mxu0 0.0
    %268 = vmatpush1.msra.mxu0 0.0
    %269 = vmatprep.subr.mxu0 0.0
    %270 = vmatpush1.msra.mxu0 0.0
    %271 = vmatprep.subr.mxu0 0.0
    %272 = vmatpush1.msra.mxu0 0.0
    %273 = vmatprep.subr.mxu0 0.0
    %274 = vmatpush1.msra.mxu0 0.0
    %275 = vmatprep.subr.mxu0 0.0
    %276 = vmatpush1.msra.mxu0 0.0
    %277 = vmatprep.subr.mxu0 0.0
    %278 = vmatpush1.msra.mxu0 0.0
    %279 = vmatprep.subr.mxu0 0.0
    %280 = vmatpush1.msra.mxu0 0.0
    %281 = vmatprep.subr.mxu0 0.0
    %282 = vmatpush1.msra.mxu0 0.0
    %283 = vmatprep.subr.mxu0 0.0
    %284 = vmatpush1.msra.mxu0 0.0
    %285 = vmatprep.subr.mxu0 0.0
    %286 = vmatpush1.msra.mxu0 0.0
    %287 = vmatprep.subr.mxu0 0.0
    %288 = vmatpush1.msra.mxu0 0.0
    %289 = vmatprep.subr.mxu0 0.0
    %290 = vmatpush1.msra.mxu0 0.0
    %291 = vmatprep.subr.mxu0 0.0
    %292 = vmatpush1.msra.mxu0 0.0
    %293 = vmatprep.subr.mxu0 0.0
    %294 = vmatpush1.msra.mxu0 0.0
    %295 = vmatprep.subr.mxu0 0.0
    %296 = vmatpush1.msra.mxu0 0.0
    %297 = vmatprep.subr.mxu0 0.0
    %298 = vmatpush1.msra.mxu0 0.0
    %299 = vmatprep.subr.mxu0 0.0
    %300 = vmatpush1.msra.mxu0 0.0
    %301 = vmatprep.mubr.f32.mxu0 0.0
    %302 = vmatmul.mubr.f32.gmra.mrb[0].mxu0 %v48
    %v303 = vpop.f32.mrb[0].mxu0
    %v304 = vadd.f32 0.0, %v303
    %v305 = vpop.f32.mrb[0].mxu0
    %306 = vmatprep.mubr.f32.mxu0 0.0
    %307 = vmatmul.mubr.f32.gmra.mrb[0].mxu0 %v51
    %v308 = vpop.f32.mrb[0].mxu0
    %v309 = vadd.f32 0.0, %v308
    %v310 = vpop.f32.mrb[0].mxu0
    %311 = vdwg.mxu0
    %314 = vrot.lane.b32.xlu0 %v226, 32
    %v315 = vpop.permute.xlu0 %314
    %316 = vrot.lane.b32.xlu0 %v227, 32
    %v317 = vpop.permute.xlu0 %316
    %vm320 = vcmask 261120
    %v321 = vsel %vm320, %v304, %v315
    %v322 = vsel %vm320, %v309, %v317
    %v324 = vlaneseq
    %v325 = vshrl.u32 %v324, 7
    %v326 = vsub.s32 0, %v325
    %v327 = vrot.slane %v236, %v326
    %vm329 = vcmask 523264
    %v331 = vsel %vm329, %v321, 0
    %v334 = vsel %vm329, %v322, 0
    %336 = vmatprep.subr.mxu0 0.0
    %337 = vmatpush1.msra.mxu0 %v228
    %338 = vmatprep.subr.mxu0 0.0
    %339 = vmatpush1.msra.mxu0 %v229
    %340 = vmatprep.subr.mxu0 0.0
    %341 = vmatpush1.msra.mxu0 %v230
    %342 = vmatprep.subr.mxu0 0.0
    %343 = vmatpush1.msra.mxu0 %v231
    %344 = vmatprep.subr.mxu0 0.0
    %345 = vmatpush1.msra.mxu0 %v232
    %346 = vmatprep.subr.mxu0 0.0
    %347 = vmatpush1.msra.mxu0 %v233
    %348 = vmatprep.subr.mxu0 0.0
    %349 = vmatpush1.msra.mxu0 %v234
    %350 = vmatprep.subr.mxu0 0.0
    %351 = vmatpush1.msra.mxu0 %v235
    %352 = vmatprep.subr.mxu0 0.0
    %353 = vmatpush1.msra.mxu0 0.0
    %354 = vmatprep.subr.mxu0 0.0
    %355 = vmatpush1.msra.mxu0 0.0
    %356 = vmatprep.subr.mxu0 0.0
    %357 = vmatpush1.msra.mxu0 0.0
    %358 = vmatprep.subr.mxu0 0.0
    %359 = vmatpush1.msra.mxu0 0.0
    %360 = vmatprep.subr.mxu0 0.0
    %361 = vmatpush1.msra.mxu0 0.0
    %362 = vmatprep.subr.mxu0 0.0
    %363 = vmatpush1.msra.mxu0 0.0
    %364 = vmatprep.subr.mxu0 0.0
    %365 = vmatpush1.msra.mxu0 0.0
    %366 = vmatprep.subr.mxu0 0.0
    %367 = vmatpush1.msra.mxu0 0.0
    %368 = vmatprep.subr.mxu0 0.0
    %369 = vmatpush1.msra.mxu0 0.0
    %370 = vmatprep.subr.mxu0 0.0
    %371 = vmatpush1.msra.mxu0 0.0
    %372 = vmatprep.subr.mxu0 0.0
    %373 = vmatpush1.msra.mxu0 0.0
    %374 = vmatprep.subr.mxu0 0.0
    %375 = vmatpush1.msra.mxu0 0.0
    %376 = vmatprep.subr.mxu0 0.0
    %377 = vmatpush1.msra.mxu0 0.0
    %378 = vmatprep.subr.mxu0 0.0
    %379 = vmatpush1.msra.mxu0 0.0
    %380 = vmatprep.subr.mxu0 0.0
    %381 = vmatpush1.msra.mxu0 0.0
    %382 = vmatprep.subr.mxu0 0.0
    %383 = vmatpush1.msra.mxu0 0.0
    %384 = vmatprep.subr.mxu0 0.0
    %385 = vmatpush1.msra.mxu0 0.0
    %386 = vmatprep.subr.mxu0 0.0
    %387 = vmatpush1.msra.mxu0 0.0
    %388 = vmatprep.subr.mxu0 0.0
    %389 = vmatpush1.msra.mxu0 0.0
    %390 = vmatprep.subr.mxu0 0.0
    %391 = vmatpush1.msra.mxu0 0.0
    %392 = vmatprep.subr.mxu0 0.0
    %393 = vmatpush1.msra.mxu0 0.0
    %394 = vmatprep.subr.mxu0 0.0
    %395 = vmatpush1.msra.mxu0 0.0
    %396 = vmatprep.subr.mxu0 0.0
    %397 = vmatpush1.msra.mxu0 0.0
    %398 = vmatprep.subr.mxu0 0.0
    %399 = vmatpush1.msra.mxu0 0.0
    %400 = vmatprep.mubr.f32.mxu0 0.0
    %401 = vmatmul.mubr.f32.gmra.mrb[0].mxu0 %v331
    %v402 = vpop.f32.mrb[0].mxu0
    %v403 = vadd.f32 %v327, %v402
    %v404 = vpop.f32.mrb[0].mxu0
    %405 = vmatprep.mubr.f32.mxu0 0.0
    %406 = vmatmul.mubr.f32.gmra.mrb[0].mxu0 %v334
    %v407 = vpop.f32.mrb[0].mxu0
    %v408 = vadd.f32 %v327, %v407
    %v409 = vpop.f32.mrb[0].mxu0
    %410 = vdwg.mxu0
    %v411 = vtanh.pop %v403
    %v412 = vtanh.pop %v408
    %413 = vmatprep.subr.mxu0 0.0
    %414 = vmatpush1.msra.mxu0 %v411
    %415 = vmatprep.subr.mxu0 0.0
    %416 = vmatpush1.msra.mxu0 %v412
    %417 = vmatprep.subr.mxu0 0.0
    %418 = vmatpush1.msra.mxu0 0.0
    %419 = vmatprep.subr.mxu0 0.0
    %420 = vmatpush1.msra.mxu0 0.0
    %421 = vmatprep.subr.mxu0 0.0
    %422 = vmatpush1.msra.mxu0 0.0
    %423 = vmatprep.subr.mxu0 0.0
    %424 = vmatpush1.msra.mxu0 0.0
    %425 = vmatprep.subr.mxu0 0.0
    %426 = vmatpush1.msra.mxu0 0.0
    %427 = vmatprep.subr.mxu0 0.0
    %428 = vmatpush1.msra.mxu0 0.0
    %429 = vmatprep.subr.mxu0 0.0
    %430 = vmatpush1.msra.mxu0 0.0
    %431 = vmatprep.subr.mxu0 0.0
    %432 = vmatpush1.msra.mxu0 0.0
    %433 = vmatprep.subr.mxu0 0.0
    %434 = vmatpush1.msra.mxu0 0.0
    %435 = vmatprep.subr.mxu0 0.0
    %436 = vmatpush1.msra.mxu0 0.0
    %437 = vmatprep.subr.mxu0 0.0
    %438 = vmatpush1.msra.mxu0 0.0
    %439 = vmatprep.subr.mxu0 0.0
    %440 = vmatpush1.msra.mxu0 0.0
    %441 = vmatprep.subr.mxu0 0.0
    %442 = vmatpush1.msra.mxu0 0.0
    %443 = vmatprep.subr.mxu0 0.0
    %444 = vmatpush1.msra.mxu0 0.0
    %445 = vmatprep.subr.mxu0 0.0
    %446 = vmatpush1.msra.mxu0 0.0
    %447 = vmatprep.subr.mxu0 0.0
    %448 = vmatpush1.msra.mxu0 0.0
    %449 = vmatprep.subr.mxu0 0.0
    %450 = vmatpush1.msra.mxu0 0.0
    %451 = vmatprep.subr.mxu0 0.0
    %452 = vmatpush1.msra.mxu0 0.0
    %453 = vmatprep.subr.mxu0 0.0
    %454 = vmatpush1.msra.mxu0 0.0
    %455 = vmatprep.subr.mxu0 0.0
    %456 = vmatpush1.msra.mxu0 0.0
    %457 = vmatprep.subr.mxu0 0.0
    %458 = vmatpush1.msra.mxu0 0.0
    %459 = vmatprep.subr.mxu0 0.0
    %460 = vmatpush1.msra.mxu0 0.0
    %461 = vmatprep.subr.mxu0 0.0
    %462 = vmatpush1.msra.mxu0 0.0
    %463 = vmatprep.subr.mxu0 0.0
    %464 = vmatpush1.msra.mxu0 0.0
    %465 = vmatprep.subr.mxu0 0.0
    %466 = vmatpush1.msra.mxu0 0.0
    %467 = vmatprep.subr.mxu0 0.0
    %468 = vmatpush1.msra.mxu0 0.0
    %469 = vmatprep.subr.mxu0 0.0
    %470 = vmatpush1.msra.mxu0 0.0
    %471 = vmatprep.subr.mxu0 0.0
    %472 = vmatpush1.msra.mxu0 0.0
    %473 = vmatprep.subr.mxu0 0.0
    %474 = vmatpush1.msra.mxu0 0.0
    %475 = vmatprep.subr.mxu0 0.0
    %476 = vmatpush1.msra.mxu0 0.0
    %477 = vmatprep.mubr.f32.mxu0 0.0
    %478 = vmatmul.mubr.f32.gmra.mrb[0].mxu0 %v48
    %v479 = vpop.f32.mrb[0].mxu0
    %v480 = vadd.f32 0.0, %v479
    %v481 = vpop.f32.mrb[0].mxu0
    %482 = vmatprep.mubr.f32.mxu0 0.0
    %483 = vmatmul.mubr.f32.gmra.mrb[0].mxu0 %v51
    %v484 = vpop.f32.mrb[0].mxu0
    %v485 = vadd.f32 0.0, %v484
    %v486 = vpop.f32.mrb[0].mxu0
    %487 = vdwg.mxu0
    %490 = vrot.lane.b32.xlu0 %v411, 32
    %v491 = vpop.permute.xlu0 %490
    %492 = vrot.lane.b32.xlu0 %v412, 32
    %v493 = vpop.permute.xlu0 %492
    %v496 = vsel %vm320, %v480, %v491
    %v497 = vsel %vm320, %v485, %v493
    %v498 = vld [vmem:[%s8] sm:$0x3]
    %v499 = vld [vmem:[%s9] sm:$0x3]
    %501 = vset.pattern.permute.xlu0 0
    %502 = vperm.xlu0 %501, %v499
    %v503 = vpop.permute.xlu0 %502
    %v506 = vsel %vm329, %v498, 0
    %v509 = vsel %vm329, %v496, 0
    %v512 = vsel %vm329, %v497, 0
    %514 = vmatprep.subr.mxu0 0.0
    %515 = vmatpush1.xpose.msra.mxu0 %v509
    %516 = vmatprep.subr.mxu0 0.0
    %517 = vmatpush1.xpose.msra.mxu0 %v512
    %518 = vmatprep.subr.mxu0 0.0
    %519 = vmatpush1.xpose.msra.mxu0 0.0
    %520 = vmatprep.subr.mxu0 0.0
    %521 = vmatpush1.xpose.msra.mxu0 0.0
    %522 = vmatprep.subr.mxu0 0.0
    %523 = vmatpush1.xpose.msra.mxu0 0.0
    %524 = vmatprep.subr.mxu0 0.0
    %525 = vmatpush1.xpose.msra.mxu0 0.0
    %526 = vmatprep.subr.mxu0 0.0
    %527 = vmatpush1.xpose.msra.mxu0 0.0
    %528 = vmatprep.subr.mxu0 0.0
    %529 = vmatpush1.xpose.msra.mxu0 0.0
    %530 = vmatprep.subr.mxu0 0.0
    %531 = vmatpush1.xpose.msra.mxu0 0.0
    %532 = vmatprep.subr.mxu0 0.0
    %533 = vmatpush1.xpose.msra.mxu0 0.0
    %534 = vmatprep.subr.mxu0 0.0
    %535 = vmatpush1.xpose.msra.mxu0 0.0
    %536 = vmatprep.subr.mxu0 0.0
    %537 = vmatpush1.xpose.msra.mxu0 0.0
    %538 = vmatprep.subr.mxu0 0.0
    %539 = vmatpush1.xpose.msra.mxu0 0.0
    %540 = vmatprep.subr.mxu0 0.0
    %541 = vmatpush1.xpose.msra.mxu0 0.0
    %542 = vmatprep.subr.mxu0 0.0
    %543 = vmatpush1.xpose.msra.mxu0 0.0
    %544 = vmatprep.subr.mxu0 0.0
    %545 = vmatpush1.xpose.msra.mxu0 0.0
    %546 = vmatprep.subr.mxu0 0.0
    %547 = vmatpush1.xpose.msra.mxu0 0.0
    %548 = vmatprep.subr.mxu0 0.0
    %549 = vmatpush1.xpose.msra.mxu0 0.0
    %550 = vmatprep.subr.mxu0 0.0
    %551 = vmatpush1.xpose.msra.mxu0 0.0
    %552 = vmatprep.subr.mxu0 0.0
    %553 = vmatpush1.xpose.msra.mxu0 0.0
    %554 = vmatprep.subr.mxu0 0.0
    %555 = vmatpush1.xpose.msra.mxu0 0.0
    %556 = vmatprep.subr.mxu0 0.0
    %557 = vmatpush1.xpose.msra.mxu0 0.0
    %558 = vmatprep.subr.mxu0 0.0
    %559 = vmatpush1.xpose.msra.mxu0 0.0
    %560 = vmatprep.subr.mxu0 0.0
    %561 = vmatpush1.xpose.msra.mxu0 0.0
    %562 = vmatprep.subr.mxu0 0.0
    %563 = vmatpush1.xpose.msra.mxu0 0.0
    %564 = vmatprep.subr.mxu0 0.0
    %565 = vmatpush1.xpose.msra.mxu0 0.0
    %566 = vmatprep.subr.mxu0 0.0
    %567 = vmatpush1.xpose.msra.mxu0 0.0
    %568 = vmatprep.subr.mxu0 0.0
    %569 = vmatpush1.xpose.msra.mxu0 0.0
    %570 = vmatprep.subr.mxu0 0.0
    %571 = vmatpush1.xpose.msra.mxu0 0.0
    %572 = vmatprep.subr.mxu0 0.0
    %573 = vmatpush1.xpose.msra.mxu0 0.0
    %574 = vmatprep.subr.mxu0 0.0
    %575 = vmatpush1.xpose.msra.mxu0 0.0
    %576 = vmatprep.subr.mxu0 0.0
    %577 = vmatpush1.xpose.msra.mxu0 0.0
    %578 = vmatprep.mubr.f32.mxu0 0.0
    %579 = vmatmul.mubr.f32.gmra.mrb[0].mxu0 %v506
    %v580 = vpop.f32.mrb[0].mxu0
    %v581 = vadd.f32 %v503, %v580
    %v582 = vpop.f32.mrb[0].mxu0
    %583 = vdwg.mxu0
    %v584 = vld [vmem:[%s3] sm:$0x1]
    %vm585 = vcmp.ne.f32.partialorder %v584, 0.0
    %v586 = vsel %vm585, -1e+30, %v581
    %vm587 = vcmask 122880
    %v588 = vsel %vm587, %v586, -inf
    %589 = vmax.xlane.f32.xlu0 %v588
    %v590 = vpop.xlane.xlu0 %589
    %v591 = vsub.f32 %v586, %v590
    %v592 = vmul.f32 %v591, 1.442695
    %v593 = vpow.pop %v592
    %v594 = vsel %vm587, %v593, 0.0
    %595 = vadd.xlane.f32.xlu0 %v594
    %v596 = vpop.xlane.xlu0 %595
    %v597 = vlog2.pop %v596
    %v598 = vmul.f32 %v597, 0.6931472
    %v599 = vadd.f32 %v598, %v590
    %v600 = vsub.f32 %v586, %v599
    %v601 = vsel %vm585, -inf, %v600
    %602 = vst.msk [vmem:[#allocation2] sm:$0x1] %vm587, %v601
    %v603 = vld [vmem:[%s2] sm:$0xff]
    %v604 = vld [vmem:[%s2 + $0x8] sm:$0xff]
    %v606 = vrot.slane %v581, 1
    %v607 = vsel %vm46, %v606, 0
    %609 = vmatprep.subr.mxu0 0.0
    %610 = vmatpush1.msra.mxu0 %v603
    %611 = vmatprep.subr.mxu0 0.0
    %612 = vmatpush1.msra.mxu0 %v604
    %613 = vmatprep.subr.mxu0 0.0
    %614 = vmatpush1.msra.mxu0 0.0
    %615 = vmatprep.subr.mxu0 0.0
    %616 = vmatpush1.msra.mxu0 0.0
    %617 = vmatprep.subr.mxu0 0.0
    %618 = vmatpush1.msra.mxu0 0.0
    %619 = vmatprep.subr.mxu0 0.0
    %620 = vmatpush1.msra.mxu0 0.0
    %621 = vmatprep.subr.mxu0 0.0
    %622 = vmatpush1.msra.mxu0 0.0
    %623 = vmatprep.subr.mxu0 0.0
    %624 = vmatpush1.msra.mxu0 0.0
    %625 = vmatprep.subr.mxu0 0.0
    %626 = vmatpush1.msra.mxu0 0.0
    %627 = vmatprep.subr.mxu0 0.0
    %628 = vmatpush1.msra.mxu0 0.0
    %629 = vmatprep.subr.mxu0 0.0
    %630 = vmatpush1.msra.mxu0 0.0
    %631 = vmatprep.subr.mxu0 0.0
    %632 = vmatpush1.msra.mxu0 0.0
    %633 = vmatprep.subr.mxu0 0.0
    %634 = vmatpush1.msra.mxu0 0.0
    %635 = vmatprep.subr.mxu0 0.0
    %636 = vmatpush1.msra.mxu0 0.0
    %637 = vmatprep.subr.mxu0 0.0
    %638 = vmatpush1.msra.mxu0 0.0
    %639 = vmatprep.subr.mxu0 0.0
    %640 = vmatpush1.msra.mxu0 0.0
    %641 = vmatprep.subr.mxu0 0.0
    %642 = vmatpush1.msra.mxu0 0.0
    %643 = vmatprep.subr.mxu0 0.0
    %644 = vmatpush1.msra.mxu0 0.0
    %645 = vmatprep.subr.mxu0 0.0
    %646 = vmatpush1.msra.mxu0 0.0
    %647 = vmatprep.subr.mxu0 0.0
    %648 = vmatpush1.msra.mxu0 0.0
    %649 = vmatprep.subr.mxu0 0.0
    %650 = vmatpush1.msra.mxu0 0.0
    %651 = vmatprep.subr.mxu0 0.0
    %652 = vmatpush1.msra.mxu0 0.0
    %653 = vmatprep.subr.mxu0 0.0
    %654 = vmatpush1.msra.mxu0 0.0
    %655 = vmatprep.subr.mxu0 0.0
    %656 = vmatpush1.msra.mxu0 0.0
    %657 = vmatprep.subr.mxu0 0.0
    %658 = vmatpush1.msra.mxu0 0.0
    %659 = vmatprep.subr.mxu0 0.0
    %660 = vmatpush1.msra.mxu0 0.0
    %661 = vmatprep.subr.mxu0 0.0
    %662 = vmatpush1.msra.mxu0 0.0
    %663 = vmatprep.subr.mxu0 0.0
    %664 = vmatpush1.msra.mxu0 0.0
    %665 = vmatprep.subr.mxu0 0.0
    %666 = vmatpush1.msra.mxu0 0.0
    %667 = vmatprep.subr.mxu0 0.0
    %668 = vmatpush1.msra.mxu0 0.0
    %669 = vmatprep.subr.mxu0 0.0
    %670 = vmatpush1.msra.mxu0 0.0
    %671 = vmatprep.subr.mxu0 0.0
    %672 = vmatpush1.msra.mxu0 0.0
    %673 = vmatprep.mubr.f32.mxu0 0.0
    %674 = vmatmul.mubr.f32.gmra.mrb[0].mxu0 %v607
    %v675 = vpop.f32.mrb[0].mxu0
    %v676 = vadd.f32 0.0, %v675
    %v677 = vpop.f32.mrb[0].mxu0
    %678 = vdwg.mxu0
    %v679 = vtanh.pop %v676
    %vm680 = vcmask 8192
    %681 = vst.msk [vmem:[#allocation4] sm:$0x1] %vm680, %v679
    // Predicated region
    $region42: #{tpu_custom_call.1} parent=1 // pred_check
      _
    $region43: #{tpu_custom_call.1} parent=1 // pred_check_branch
      %683 = sbr.rel (0) target = $region45
    $region44: #{tpu_custom_call.1} parent=1 // pred_region
      %s685 = ssub.s32 16, 16
      %686 = vsyncadd [#allocation3], %s685
      %s688 = sshll.u32 [#allocation2], 4
      %s689 = int_to_ptr.vmem [resolvable:$true] %s688
      %691 = dma.vmem_to_hbm [thread:$0]  %s689, 16, %s10, [#allocation3]
    $region45: #{tpu_custom_call.1} parent=1 // pred_fallthru
      _
    // Predicated region
    $region46: #{tpu_custom_call.1} parent=1 // pred_check
      _
    $region47: #{tpu_custom_call.1} parent=1 // pred_check_branch
      %693 = sbr.rel (0) target = $region49
    $region48: #{tpu_custom_call.1} parent=1 // pred_region
      %s695 = ssub.s32 16, 16
      %696 = vsyncadd [#allocation5], %s695
      %s698 = sshll.u32 [#allocation4], 4
      %s699 = int_to_ptr.vmem [resolvable:$true] %s698
      %701 = dma.vmem_to_hbm [thread:$0]  %s699, 16, %s11, [#allocation5]
    $region49: #{tpu_custom_call.1} parent=1 // pred_fallthru
      _
    // Predicated region
    $region50: #{tpu_custom_call.1} parent=1 // pred_check
      _
    $region51: #{tpu_custom_call.1} parent=1 // pred_check_branch
      %703 = sbr.rel (0) target = $region53
    $region52: #{tpu_custom_call.1} parent=1 // pred_region
      %704 = dma.done [#allocation3], 16
    $region53: #{tpu_custom_call.1} parent=1 // pred_fallthru
      _
    // Predicated region
    $region54: #{tpu_custom_call.1} parent=1 // pred_check
      _
    $region55: #{tpu_custom_call.1} parent=1 // pred_check_branch
      %706 = sbr.rel (0) target = $region57
    $region56: #{tpu_custom_call.1} parent=1 // pred_region
      %707 = dma.done [#allocation5], 16
    $region57: #{tpu_custom_call.1} parent=1 // pred_fallthru
      _
    %708 = vsyncpa [#allocation3], 1
    %709 = vsyncpa [#allocation5], 1

</llo_original>
